<compile_context>
chip_gen: v7x
topology: tpu7x:2x2x1
jax: 0.10.0
libtpu: 0.0.40
codegen_flags: <defaults>
</compile_context>

<pallas_src>
import functools

import jax
import jax.numpy as jnp
from jax.experimental import pallas as pl
from jax.experimental.pallas import tpu as pltpu

NEG_INF = -1e9  # shared.neg_inf


def _round_up(x, m):
    return -(-x // m) * m


def biattention_kernel(qlen_ref, c_ref, q_ref, w_ref, att1_ref, att2_ref, g_ref,
                       *, mxu_dtype, lane_dense_slices):
    """One batch element per grid step (leading batch dim squeezed away).

    qlen_ref: (B,)    int32 SMEM (scalar prefetch) -- per-example query lengths
    c_ref:    (T, E)  context encodings
    q_ref:    (Jp, E) query encodings, zero-padded along J to a lane multiple
    w_ref:    (4, E)  rows: w_c, w_q, w_d, bias (bias stored at [3, 0])
    att1_ref: (T, Jp)
    att2_ref: (1, T)
    g_ref:    (T, 4E)
    """
    T, E = c_ref.shape
    Jp = q_ref.shape[0]
    b = pl.program_id(0)
    qlen = qlen_ref[b]                     # scalar read from SMEM

    w = w_ref[...].astype(jnp.float32)
    w_c = w[0:1, :]                        # (1, E)
    w_q = w[1:2, :]                        # (1, E)
    w_d = w[2:3, :]                        # (1, E)
    bias = w[3, 0]                         # scalar

    C = c_ref[...].astype(jnp.float32)     # (T, E)
    Q = q_ref[...].astype(jnp.float32)     # (Jp, E)

    # Additive mask row: 0 where j < qlen else NEG_INF.  A single (1, Jp) row
    # folded into the broadcast add below (no (T, Jp) iota + select).  Also
    # masks the zero padding J..Jp automatically.
    j_row = jax.lax.broadcasted_iota(jnp.int32, (1, Jp), 1)
    mask_row = jnp.where(j_row < qlen, jnp.float32(0.0), jnp.float32(NEG_INF))

    # ---- trilinear scores: bf16 operands to the MXU, f32 accumulation --------
    # contract on E for both operands (no materialized transpose).
    cq = jax.lax.dot_general(
        C.astype(mxu_dtype), (Q * w_d).astype(mxu_dtype),
        dimension_numbers=(((1,), (1,)), ((), ())),
        preferred_element_type=jnp.float32)                          # (T, Jp)
    c_part = jnp.sum(C * w_c, axis=1, keepdims=True)                 # (T, 1)
    q_part = jnp.sum(Q * w_q, axis=1, keepdims=True).T               # (1, Jp)
    scores = cq + c_part + (q_part + bias + mask_row)                # (T, Jp)

    # ---- att1 = softmax over the (lane) query dim -----------------------------
    m1 = jnp.max(scores, axis=1, keepdims=True)                      # (T, 1)
    e1 = jnp.exp(scores - m1)
    # TODO(synk): if bundle analysis shows the EUP slot saturating on v6e/v7x,
    # compute e1 in bf16 there (keep f32 on v5e: no bf16 EUP/VPU).
    att1 = e1 * pl.reciprocal(jnp.sum(e1, axis=1, keepdims=True), approx=True)

    # ---- att2 = softmax over context dim of the per-row max -------------------
    s2 = m1.T                                                        # (1, T)
    e2 = jnp.exp(s2 - jnp.max(s2, axis=1, keepdims=True))
    att2 = e2 * pl.reciprocal(jnp.sum(e2, axis=1, keepdims=True), approx=True)

    # ---- aggregations ----------------------------------------------------------
    # agg1: att1 values live in [0,1] -> safe bf16 cast; K = Jp >= 128.
    agg1 = jnp.dot(att1.astype(mxu_dtype), Q.astype(mxu_dtype),
                   preferred_element_type=jnp.float32)               # (T, E)
    # (1,T)@(T,E) is a degenerate MXU shape; do it as a sublane (XLU) reduce.
    agg2 = jnp.sum(att2.T * C, axis=0, keepdims=True)                # (1, E)

    # ---- outputs ---------------------------------------------------------------
    att1_ref[...] = att1.astype(att1_ref.dtype)
    att2_ref[...] = att2.astype(att2_ref.dtype)
    # TODO(synk): G's first slab is a verbatim copy of the input C; skip writing
    # it (25% of G's HBM write bytes) if the downstream consumer can read C.
    if lane_dense_slices:
        # E is a lane multiple: each E-wide slice store is already unmasked.
        g_ref[:, 0:E] = C.astype(g_ref.dtype)
        g_ref[:, E:2 * E] = agg1.astype(g_ref.dtype)
        g_ref[:, 2 * E:3 * E] = (C * agg1).astype(g_ref.dtype)
        g_ref[:, 3 * E:4 * E] = (C * agg2).astype(g_ref.dtype)
    else:
        # E not a lane multiple: assemble (T, 4E) in-register and store once
        # (one unmasked vst stream instead of four masked vst.msk streams).
        g = jnp.concatenate([C, agg1, C * agg1, C * agg2], axis=1)
        g_ref[...] = g.astype(g_ref.dtype)


def _vmem_limit_bytes(T, Jp, E):
    """Generation-aware VMEM limit: cover double-buffered blocks + f32 softmax
    intermediates, capped below physical capacity (64 MiB on v7x, 128 elsewhere)."""
    try:
        cap = int(pltpu.get_tpu_info().vmem_capacity_bytes)
    except Exception:
        cap = 64 << 20  # conservative (v7x physical) fallback
    in_bytes = 4 * (T * E + Jp * E + 4 * E)
    out_bytes = 4 * (T * Jp + T + 4 * T * E)
    needed = 2 * (in_bytes + out_bytes) + 8 * 4 * T * Jp + (4 << 20)
    return int(min(0.9 * cap, max(needed, 32 << 20)))


def biattention_forward(C, Q, query_l, w, *, mxu_dtype=jnp.bfloat16, trim_att1=False):
    """C: (B, T, E), Q: (B, J, E), query_l: (B,) int, w: (4, E).

    Returns (att1, att2 (B,1,T), G (B,T,4E)).

    att1 is returned padded along the query dim to Jp = round_up(J, 128) unless
    trim_att1=True; the padded columns are exactly 0 after the masked softmax,
    so consumers can slice lazily (avoids a wrapper-side slice that re-reads and
    re-writes the largest output at the memory-bound roofline).
    """
    B, T, E = C.shape
    J = Q.shape[1]

    # Pad J up to a lane multiple: lane-dense att1 stores and K >= 128 for agg1.
    Jp = _round_up(J, 128)
    if Jp != J:
        Q = jnp.pad(Q, ((0, 0), (0, Jp - J), (0, 0)))

    query_l = query_l.astype(jnp.int32)

    kernel = functools.partial(biattention_kernel,
                               mxu_dtype=mxu_dtype,
                               lane_dense_slices=(E % 128 == 0))

    out_shapes = (
        jax.ShapeDtypeStruct((B, T, Jp), jnp.float32),      # att1 (padded along J)
        jax.ShapeDtypeStruct((B, 1, T), jnp.float32),       # att2
        jax.ShapeDtypeStruct((B, T, 4 * E), jnp.float32),   # G
    )

    # One batch element per grid step: the (T, Jp) f32 softmax intermediates'
    # live ranges are bounded by the grid iteration (no unrolled per-batch
    # loop), and grid length == B gives both v7x TensorCores work when B >= 2.
    # TODO(synk): if B == 1 in production, split T into a second parallel grid
    # axis so both v7x TensorCores get work.
    grid_spec = pltpu.PrefetchScalarGridSpec(
        num_scalar_prefetch=1,                              # query_l -> SMEM
        grid=(B,),
        in_specs=[
            pl.BlockSpec((None, T, E), lambda b, ql: (b, 0, 0)),
            pl.BlockSpec((None, Jp, E), lambda b, ql: (b, 0, 0)),
            pl.BlockSpec((4, E), lambda b, ql: (0, 0)),
        ],
        out_specs=[
            pl.BlockSpec((None, T, Jp), lambda b, ql: (b, 0, 0)),
            pl.BlockSpec((None, 1, T), lambda b, ql: (b, 0, 0)),
            pl.BlockSpec((None, T, 4 * E), lambda b, ql: (b, 0, 0)),
        ],
    )

    att1_p, att2, G = pl.pallas_call(
        kernel,
        out_shape=out_shapes,
        grid_spec=grid_spec,
        compiler_params=pltpu.CompilerParams(
            dimension_semantics=("parallel",),
            vmem_limit_bytes=_vmem_limit_bytes(T, Jp, E),
        ),
    )(query_l, C, Q, w)

    if trim_att1 and Jp != J:
        att1_p = att1_p[:, :, :J]
    return att1_p, att2, G


def biattention_reference(C, Q, query_l, w):
    """Pure-JAX reference mirroring the PyTorch forward semantics."""
    B, T, E = C.shape
    J = Q.shape[1]
    mask = (jnp.arange(J)[None, :] < query_l[:, None]).astype(C.dtype)       # (B, J)
    mask = jnp.broadcast_to(mask[:, None, :], (B, T, J))
    w_c, w_q, w_d = w[0], w[1], w[2]
    bias = w[3, 0]
    scores = (jnp.einsum('bte,e->bt', C, w_c)[:, :, None]
              + jnp.einsum('bje,e->bj', Q, w_q)[:, None, :]
              + jnp.einsum('bte,e,bje->btj', C, w_d, Q)
              + bias)
    scores = scores * mask + (1.0 - mask) * NEG_INF                          # masked_fill_scores
    att1 = jax.nn.softmax(scores, axis=2)
    score2 = jnp.max(scores, axis=2)[:, None, :]                             # (B, 1, T)
    att2 = jax.nn.softmax(score2, axis=2)
    agg1 = jnp.einsum('btj,bje->bte', att1, Q)
    agg2 = jnp.broadcast_to(jnp.einsum('bot,bte->boe', att2, C), C.shape)
    G = jnp.concatenate([C, agg1, C * agg1, C * agg2], axis=2)
    return att1, att2, G


if __name__ == "__main__":
    # opt.hidden_size = 16, use_elmo_post = 0 -> enc_size = 32
    # batch_l = 2, context_l = 16, max_query_l = 8
    B, T, J, E = 2, 16, 8, 32

    key = jax.random.PRNGKey(0)
    kc, kq, kw = jax.random.split(key, 3)
    C = jax.random.normal(kc, (B, T, E), dtype=jnp.float32)
    Q = jax.random.normal(kq, (B, J, E), dtype=jnp.float32)

    # Deterministic trilinear parameters: w_c, w_q, w_d rows + bias at [3, 0].
    w = 0.1 * jax.random.normal(kw, (4, E), dtype=jnp.float32)
    w = w.at[3, 1:].set(0.0)

    # Per-example query lengths [8, 6]; mask is built in-kernel from these.
    query_l = jnp.array([8, 6], dtype=jnp.int32)

    att1_p, att2, G = biattention_forward(C, Q, query_l, w)
    jax.block_until_ready((att1_p, att2, G))

    # Padded att1 columns (j >= J) must be (numerically exactly) zero after the
    # masked softmax -> consumers can slice lazily with no correctness cost.
    assert float(jnp.max(jnp.abs(att1_p[:, :, J:]))) <= 1e-30, "padded att1 not zero"
    att1 = att1_p[:, :, :J]   # consumer-side (test-only) lazy slice

    r_att1, r_att2, r_G = biattention_reference(C, Q, query_l, w)

    # Tolerances account for bf16 MXU operands (f32 accumulation), the EUP
    # approximate reciprocal in the softmax normalizations, and MXU
    # accumulation-order differences.
    assert jnp.allclose(att1, r_att1, rtol=5e-2, atol=5e-3), "att1 mismatch"
    assert jnp.allclose(att2, r_att2, rtol=5e-2, atol=5e-3), "att2 mismatch"
    assert jnp.allclose(G, r_G, rtol=5e-2, atol=5e-2), "G mismatch"

    print("KERNEL_OK")
</pallas_src>

<mosaic_0001>
module attributes {stable_mosaic.version = 11 : i64} {
  func.func @biattention_kernel(%arg0: i32, %arg1: memref<2xi32, #tpu.memory_space<smem>>, %arg2: memref<1x16x32xf32, #tpu.memory_space<vmem>>, %arg3: memref<1x128x32xf32, #tpu.memory_space<vmem>>, %arg4: memref<4x32xf32, #tpu.memory_space<vmem>>, %arg5: memref<1x16x128xf32, #tpu.memory_space<vmem>>, %arg6: memref<1x1x16xf32, #tpu.memory_space<vmem>>, %arg7: memref<1x16x128xf32, #tpu.memory_space<vmem>>) attributes {dimension_semantics = [#tpu.dimension_semantics<parallel>], iteration_bounds = array<i64: 2>, scalar_prefetch = 1 : i64, scratch_operands = 0 : i64, tpu.core_type = #tpu.core_type<tc>, window_params = [{transform_indices = @transform_0, window_bounds = array<i64: 1, 16, 32>}, {transform_indices = @transform_1, window_bounds = array<i64: 1, 128, 32>}, {pipeline_mode = #tpu.pipeline_mode<synchronous>, transform_indices = @transform_2, window_bounds = array<i64: 4, 32>}, {transform_indices = @transform_3, window_bounds = array<i64: 1, 16, 128>}, {transform_indices = @transform_4, window_bounds = array<i64: 1, 1, 16>}, {transform_indices = @transform_5, window_bounds = array<i64: 1, 16, 128>}]} {
    %0 = arith.index_cast %arg0 : i32 to index
    %1 = memref.load %arg1[%0] : memref<2xi32, #tpu.memory_space<smem>>
    %c0 = arith.constant 0 : index
    %c0_0 = arith.constant 0 : index
    %2 = vector.load %arg4[%c0, %c0_0] : memref<4x32xf32, #tpu.memory_space<vmem>>, vector<4x32xf32>
    %3 = vector.extract_strided_slice %2 {offsets = [0, 0], sizes = [1, 32], strides = [1, 1]} : vector<4x32xf32> to vector<1x32xf32>
    %4 = vector.extract_strided_slice %2 {offsets = [1, 0], sizes = [1, 32], strides = [1, 1]} : vector<4x32xf32> to vector<1x32xf32>
    %5 = vector.extract_strided_slice %2 {offsets = [2, 0], sizes = [1, 32], strides = [1, 1]} : vector<4x32xf32> to vector<1x32xf32>
    %6 = vector.extract_strided_slice %2 {offsets = [3, 0], sizes = [1, 1], strides = [1, 1]} : vector<4x32xf32> to vector<1x1xf32>
    %7 = vector.extract %6[0, 0] : f32 from vector<1x1xf32>
    %c0_1 = arith.constant 0 : index
    %c0_2 = arith.constant 0 : index
    %c0_3 = arith.constant 0 : index
    %8 = vector.load %arg2[%c0_1, %c0_2, %c0_3] : memref<1x16x32xf32, #tpu.memory_space<vmem>>, vector<1x16x32xf32>
    %9 = vector.shape_cast %8 : vector<1x16x32xf32> to vector<16x32xf32>
    %c0_4 = arith.constant 0 : index
    %c0_5 = arith.constant 0 : index
    %c0_6 = arith.constant 0 : index
    %10 = vector.load %arg3[%c0_4, %c0_5, %c0_6] : memref<1x128x32xf32, #tpu.memory_space<vmem>>, vector<1x128x32xf32>
    %11 = vector.shape_cast %10 : vector<1x128x32xf32> to vector<128x32xf32>
    %12 = tpu.iota {dimensions = array<i32: 1>} : vector<1x128xi32>
    %13 = vector.broadcast %1 : i32 to vector<1x128xi32>
    %14 = arith.cmpi slt, %12, %13 : vector<1x128xi32>
    %cst = arith.constant 0.000000e+00 : f32
    %cst_7 = arith.constant -1.000000e+09 : f32
    %15 = vector.broadcast %cst : f32 to vector<1x128xf32>
    %16 = vector.broadcast %cst_7 : f32 to vector<1x128xf32>
    %17 = arith.select %14, %15, %16 : vector<1x128xi1>, vector<1x128xf32>
    %18 = arith.truncf %9 : vector<16x32xf32> to vector<16x32xbf16>
    %19 = vector.broadcast %5 : vector<1x32xf32> to vector<128x32xf32>
    %20 = arith.mulf %11, %19 : vector<128x32xf32>
    %21 = arith.truncf %20 : vector<128x32xf32> to vector<128x32xbf16>
    %cst_8 = arith.constant dense<0.000000e+00> : vector<16x128xf32>
    %22 = tpu.matmul %18, %21, %cst_8 {dimension_numbers = #tpu.dot_dimension_numbers<[1], [1], [0], [0], [0, 0, 1, 0], [], []>} : vector<16x32xbf16>, vector<128x32xbf16>, vector<16x128xf32> -> vector<16x128xf32>
    %23 = vector.broadcast %3 : vector<1x32xf32> to vector<16x32xf32>
    %24 = arith.mulf %9, %23 : vector<16x32xf32>
    %cst_9 = arith.constant dense<0.000000e+00> : vector<16xf32>
    %25 = vector.multi_reduction <add>, %24, %cst_9 [1] : vector<16x32xf32> to vector<16xf32>
    %26 = vector.shape_cast %25 : vector<16xf32> to vector<16x1xf32>
    %27 = vector.broadcast %4 : vector<1x32xf32> to vector<128x32xf32>
    %28 = arith.mulf %11, %27 : vector<128x32xf32>
    %cst_10 = arith.constant dense<0.000000e+00> : vector<128xf32>
    %29 = vector.multi_reduction <add>, %28, %cst_10 [1] : vector<128x32xf32> to vector<128xf32>
    %30 = vector.shape_cast %29 : vector<128xf32> to vector<128x1xf32>
    %31 = tpu.transpose %30, [1, 0] : vector<128x1xf32> -> vector<1x128xf32>
    %32 = vector.broadcast %26 : vector<16x1xf32> to vector<16x128xf32>
    %33 = arith.addf %22, %32 : vector<16x128xf32>
    %34 = vector.broadcast %7 : f32 to vector<1x128xf32>
    %35 = arith.addf %31, %34 : vector<1x128xf32>
    %36 = arith.addf %35, %17 : vector<1x128xf32>
    %37 = vector.broadcast %36 : vector<1x128xf32> to vector<16x128xf32>
    %38 = arith.addf %33, %37 : vector<16x128xf32>
    %cst_11 = arith.constant dense<0xFF800000> : vector<16xf32>
    %39 = vector.multi_reduction <maximumf>, %38, %cst_11 [1] : vector<16x128xf32> to vector<16xf32>
    %40 = vector.shape_cast %39 : vector<16xf32> to vector<16x1xf32>
    %41 = vector.broadcast %40 : vector<16x1xf32> to vector<16x128xf32>
    %42 = arith.subf %38, %41 : vector<16x128xf32>
    %43 = math.exp %42 : vector<16x128xf32>
    %cst_12 = arith.constant dense<0.000000e+00> : vector<16xf32>
    %44 = vector.multi_reduction <add>, %43, %cst_12 [1] : vector<16x128xf32> to vector<16xf32>
    %45 = vector.shape_cast %44 : vector<16xf32> to vector<16x1xf32>
    %46 = tpu.reciprocal %45 {approx = true} : vector<16x1xf32> -> vector<16x1xf32>
    %47 = vector.broadcast %46 : vector<16x1xf32> to vector<16x128xf32>
    %48 = arith.mulf %43, %47 : vector<16x128xf32>
    %49 = tpu.transpose %40, [1, 0] : vector<16x1xf32> -> vector<1x16xf32>
    %cst_13 = arith.constant dense<0xFF800000> : vector<1xf32>
    %50 = vector.multi_reduction <maximumf>, %49, %cst_13 [1] : vector<1x16xf32> to vector<1xf32>
    %51 = vector.shape_cast %50 : vector<1xf32> to vector<1x1xf32>
    %52 = vector.broadcast %51 : vector<1x1xf32> to vector<1x16xf32>
    %53 = arith.subf %49, %52 : vector<1x16xf32>
    %54 = math.exp %53 : vector<1x16xf32>
    %cst_14 = arith.constant dense<0.000000e+00> : vector<1xf32>
    %55 = vector.multi_reduction <add>, %54, %cst_14 [1] : vector<1x16xf32> to vector<1xf32>
    %56 = vector.shape_cast %55 : vector<1xf32> to vector<1x1xf32>
    %57 = tpu.reciprocal %56 {approx = true} : vector<1x1xf32> -> vector<1x1xf32>
    %58 = vector.broadcast %57 : vector<1x1xf32> to vector<1x16xf32>
    %59 = arith.mulf %54, %58 : vector<1x16xf32>
    %60 = arith.truncf %48 : vector<16x128xf32> to vector<16x128xbf16>
    %61 = arith.truncf %11 : vector<128x32xf32> to vector<128x32xbf16>
    %cst_15 = arith.constant dense<0.000000e+00> : vector<16x32xf32>
    %62 = tpu.matmul %60, %61, %cst_15 {dimension_numbers = #tpu.dot_dimension_numbers<[1], [0], [0], [1], [0, 0, 1, 1], [], []>} : vector<16x128xbf16>, vector<128x32xbf16>, vector<16x32xf32> -> vector<16x32xf32>
    %63 = tpu.transpose %59, [1, 0] : vector<1x16xf32> -> vector<16x1xf32>
    %64 = vector.broadcast %63 : vector<16x1xf32> to vector<16x32xf32>
    %65 = arith.mulf %64, %9 : vector<16x32xf32>
    %cst_16 = arith.constant dense<0.000000e+00> : vector<32xf32>
    %66 = vector.multi_reduction <add>, %65, %cst_16 [0] : vector<16x32xf32> to vector<32xf32>
    %67 = vector.shape_cast %66 : vector<32xf32> to vector<1x32xf32>
    %c0_17 = arith.constant 0 : index
    %c0_18 = arith.constant 0 : index
    %c0_19 = arith.constant 0 : index
    %68 = vector.load %arg5[%c0_17, %c0_18, %c0_19] : memref<1x16x128xf32, #tpu.memory_space<vmem>>, vector<1x16x128xf32>
    %69 = vector.shape_cast %68 : vector<1x16x128xf32> to vector<16x128xf32>
    %70 = vector.shape_cast %48 : vector<16x128xf32> to vector<1x16x128xf32>
    tpu.vector_store %arg5[%c0_17, %c0_18, %c0_19], %70 {strides = array<i32>} : memref<1x16x128xf32, #tpu.memory_space<vmem>>, vector<1x16x128xf32>,
    %c0_20 = arith.constant 0 : index
    %c0_21 = arith.constant 0 : index
    %c0_22 = arith.constant 0 : index
    %71 = vector.load %arg6[%c0_20, %c0_21, %c0_22] : memref<1x1x16xf32, #tpu.memory_space<vmem>>, vector<1x1x16xf32>
    %72 = vector.shape_cast %71 : vector<1x1x16xf32> to vector<1x16xf32>
    %73 = vector.shape_cast %59 : vector<1x16xf32> to vector<1x1x16xf32>
    tpu.vector_store %arg6[%c0_20, %c0_21, %c0_22], %73 {strides = array<i32>} : memref<1x1x16xf32, #tpu.memory_space<vmem>>, vector<1x1x16xf32>,
    %74 = arith.mulf %9, %62 : vector<16x32xf32>
    %75 = vector.broadcast %67 : vector<1x32xf32> to vector<16x32xf32>
    %76 = arith.mulf %9, %75 : vector<16x32xf32>
    %77 = tpu.concatenate %9, %62, %74, %76 in 1 : vector<16x32xf32>, vector<16x32xf32>, vector<16x32xf32>, vector<16x32xf32> -> vector<16x128xf32>
    %c0_23 = arith.constant 0 : index
    %c0_24 = arith.constant 0 : index
    %c0_25 = arith.constant 0 : index
    %78 = vector.load %arg7[%c0_23, %c0_24, %c0_25] : memref<1x16x128xf32, #tpu.memory_space<vmem>>, vector<1x16x128xf32>
    %79 = vector.shape_cast %78 : vector<1x16x128xf32> to vector<16x128xf32>
    %80 = vector.shape_cast %77 : vector<16x128xf32> to vector<1x16x128xf32>
    tpu.vector_store %arg7[%c0_23, %c0_24, %c0_25], %80 {strides = array<i32>} : memref<1x16x128xf32, #tpu.memory_space<vmem>>, vector<1x16x128xf32>,
    return
  }
  func.func @transform_0(%arg0: i32, %arg1: memref<2xi32, #tpu.memory_space<smem>>) -> (i32, i32, i32) {
    %c0_i32 = arith.constant 0 : i32
    %c0_i32_0 = arith.constant 0 : i32
    %c0_i32_1 = arith.constant 0 : i32
    return %arg0, %c0_i32, %c0_i32_0 : i32, i32, i32
  }
  func.func @transform_1(%arg0: i32, %arg1: memref<2xi32, #tpu.memory_space<smem>>) -> (i32, i32, i32) {
    %c0_i32 = arith.constant 0 : i32
    %c0_i32_0 = arith.constant 0 : i32
    %c0_i32_1 = arith.constant 0 : i32
    return %arg0, %c0_i32, %c0_i32_0 : i32, i32, i32
  }
  func.func @transform_2(%arg0: i32, %arg1: memref<2xi32, #tpu.memory_space<smem>>) -> (i32, i32) {
    %c0_i32 = arith.constant 0 : i32
    %c0_i32_0 = arith.constant 0 : i32
    %c0_i32_1 = arith.constant 0 : i32
    return %c0_i32, %c0_i32_0 : i32, i32
  }
  func.func @transform_3(%arg0: i32, %arg1: memref<2xi32, #tpu.memory_space<smem>>) -> (i32, i32, i32) {
    %c0_i32 = arith.constant 0 : i32
    %c0_i32_0 = arith.constant 0 : i32
    %c0_i32_1 = arith.constant 0 : i32
    return %arg0, %c0_i32, %c0_i32_0 : i32, i32, i32
  }
  func.func @transform_4(%arg0: i32, %arg1: memref<2xi32, #tpu.memory_space<smem>>) -> (i32, i32, i32) {
    %c0_i32 = arith.constant 0 : i32
    %c0_i32_0 = arith.constant 0 : i32
    %c0_i32_1 = arith.constant 0 : i32
    return %arg0, %c0_i32, %c0_i32_0 : i32, i32, i32
  }
  func.func @transform_5(%arg0: i32, %arg1: memref<2xi32, #tpu.memory_space<smem>>) -> (i32, i32, i32) {
    %c0_i32 = arith.constant 0 : i32
    %c0_i32_0 = arith.constant 0 : i32
    %c0_i32_1 = arith.constant 0 : i32
    return %arg0, %c0_i32, %c0_i32_0 : i32, i32, i32
  }
}

</mosaic_0001>

<llo_original>
// kernel: tpu_custom_call.1
$region0: #{tpu_custom_call.1}
  #allocation0 [shape = 'u32[]', space=smem, size = 0x4, offset = 0x4, fixed_abs, tag = 'smem constant byte address 0x4 - core index']
  #allocation1 [shape = 'u32[144,128]{1,0:T(1,128)}', space=vmem, size = 0x12000, scoped, tag = 'internal scratch']
  #allocation2 [shape = 's32[1]{0}', space=sflag, size = 0x4, scoped, tag = 'scoped memory for tpu_custom_call.1']
  #allocation3 [shape = 'u8[512]{0}', space=smem, size = 0x200, scoped, tag = 'prefetched SMEM operand 0']
  %s0 = inlined_call_operand.vmem [shape: s32[2], index: 0, kind: input, shape index: {}]
  %s1 = inlined_call_operand.vmem [shape: f32[2,16,32], index: 1, kind: input, shape index: {}]
  %s2 = inlined_call_operand.vmem [shape: f32[2,128,32], index: 2, kind: input, shape index: {}]
  %s3 = inlined_call_operand.vmem [shape: f32[4,32], index: 3, kind: input, shape index: {}]
  %s4 = inlined_call_operand.hbm [shape: f32[2,16,128], index: 4, kind: output, shape index: {0}]
  %s5 = inlined_call_operand.hbm [shape: f32[2,1,16], index: 5, kind: output, shape index: {1}]
  %s6 = inlined_call_operand.hbm [shape: f32[2,16,128], index: 6, kind: output, shape index: {2}]
  %7 = xla_tuple %s4, %s5, %s6
  %s8 = sld [smem:[#allocation0]]
  $region61: #{tpu_custom_call.1} parent=0
    _
  %s10 = ssub.s32 1, %s8
  %s11 = scalar_select 0, %s10, %s8
  %s12 = sshll.u32 %s0, 4
  %s13 = int_to_ptr.vmem [resolvable:$true] %s12
  %15 = dma.vmem_to_smem %s13, 16, [#allocation3], [#allocation2]
  %16 = dma.done [#allocation2], 16
  %17 = sfence
  $region1: #{tpu_custom_call.1} parent=0
    #allocation4 [shape = 'u8[16384]{0}', space=vmem, size = 0x4000, scoped, tag = 'output window, operand 0']
    #allocation5 [shape = 's32[2]{0}', space=sflag, size = 0x8, scoped, tag = 'scoped memory for tpu_custom_call.1']
    #allocation6 [shape = 'u8[1024]{0}', space=vmem, size = 0x400, scoped, tag = 'output window, operand 1']
    #allocation7 [shape = 's32[2]{0}', space=sflag, size = 0x8, scoped, tag = 'scoped memory for tpu_custom_call.1']
    #allocation8 [shape = 'u8[16384]{0}', space=vmem, size = 0x4000, scoped, tag = 'output window, operand 2']
    %18 = vsyncpa [#allocation5], 0
    %s19 = scalar_lea.sflag [#allocation5], 1
    %20 = vsyncpa %s19, 0
    %21 = vsyncpa [#allocation7], 0
    %s22 = scalar_lea.sflag [#allocation7], 1
    %23 = vsyncpa %s22, 0
    loop: start=0, step=1, limit=4
    $region2: #{tpu_custom_call.1} parent=1 // loop_pre_header
      _
    $region3: #{tpu_custom_call.1} parent=1 // loop_header
      %s25 = sphi 0, %s29
      %p26 = scmp.ge.s32.totalorder %s25, 4
      %s35 = sphi 0, %s37
      %s38 = sphi 0, %s35
      %s39 = sphi 0, %s38
      %s55 = sphi 0, %s39
      %s61 = sphi 0, %s63
      %s64 = sphi 0, %s61
      %s65 = sphi 0, %s64
      %s81 = sphi 0, %s65
      %s85 = sphi 0, %s85
      %s87 = sphi 0, %s85
      %s88 = sphi 0, %s87
      %s102 = sphi 0, %s88
      %s108 = sphi 0, %s110
      %s111 = sphi 0, %s108
      %s112 = sphi 0, %s111
      %s128 = sphi 0, %s112
      %s134 = sphi 0, %s136
      %s137 = sphi 0, %s134
      %s138 = sphi 0, %s137
      %s154 = sphi 0, %s138
      %s160 = sphi 0, %s162
      %s163 = sphi 0, %s160
      %s164 = sphi 0, %s163
      %s180 = sphi 0, %s164
    $region4: #{tpu_custom_call.1} parent=1 // loop_header_branch
      %28 = sbr.rel (%p26) target = $region8
    $region5: #{tpu_custom_call.1} parent=1 // loop_body
      %s30 = ssub.s32 %s25, 1
      %s31 = ssub.s32 %s25, 2
      %s32 = sadd.s32 %s25, 1
      %s33 = ssub.s32 %s25, %s32
      %p34 = scmp.eq.s32.totalorder %s33, 0
      %s36 = sadd.s32 %s35, 1
      %s37 = scalar_select %p34, %s35, %s36
      %p40 = pneg %p34
      %p41 = scmp.eq.s32.totalorder %s25, 1
      %p42 = por %p40, %p41
      %p43 = scmp.ne.s32.totalorder %s35, %s38
      %p44 = scmp.eq.s32.totalorder %s25, 0
      %p45 = por %p43, %p44
      %p46 = scmp.ne.s32.totalorder %s35, %s38
      %p47 = scmp.eq.s32.totalorder %s30, 1
      %p48 = por %p46, %p47
      %p49 = scmp.ne.s32.totalorder %s38, %s39
      %p50 = scmp.eq.s32.totalorder %s30, 0
      %p51 = por %p49, %p50
      %p52 = scmp.ne.s32.totalorder %s38, %s39
      %p53 = scmp.eq.s32.totalorder %s31, 1
      %p54 = por %p52, %p53
      %p56 = scmp.ne.s32.totalorder %s39, %s55
      %p57 = scmp.eq.s32.totalorder %s31, 0
      %p58 = por %p56, %p57
      %s59 = ssub.s32 %s25, %s32
      %p60 = scmp.eq.s32.totalorder %s59, 0
      %s62 = sadd.s32 %s61, 1
      %s63 = scalar_select %p60, %s61, %s62
      %p66 = pneg %p60
      %p67 = scmp.eq.s32.totalorder %s25, 1
      %p68 = por %p66, %p67
      %p69 = scmp.ne.s32.totalorder %s61, %s64
      %p70 = scmp.eq.s32.totalorder %s25, 0
      %p71 = por %p69, %p70
      %p72 = scmp.ne.s32.totalorder %s61, %s64
      %p73 = scmp.eq.s32.totalorder %s30, 1
      %p74 = por %p72, %p73
      %p75 = scmp.ne.s32.totalorder %s64, %s65
      %p76 = scmp.eq.s32.totalorder %s30, 0
      %p77 = por %p75, %p76
      %p78 = scmp.ne.s32.totalorder %s64, %s65
      %p79 = scmp.eq.s32.totalorder %s31, 1
      %p80 = por %p78, %p79
      %p82 = scmp.ne.s32.totalorder %s65, %s81
      %p83 = scmp.eq.s32.totalorder %s31, 0
      %p84 = por %p82, %p83
      %s86 = sadd.s32 %s85, 1
      %p89 = scmp.eq.s32.totalorder %s25, 1
      %p90 = scmp.ne.s32.totalorder %s85, %s87
      %p91 = scmp.eq.s32.totalorder %s25, 0
      %p92 = por %p90, %p91
      %p93 = scmp.ne.s32.totalorder %s85, %s87
      %p94 = scmp.eq.s32.totalorder %s30, 1
      %p95 = por %p93, %p94
      %p96 = scmp.ne.s32.totalorder %s87, %s88
      %p97 = scmp.eq.s32.totalorder %s30, 0
      %p98 = por %p96, %p97
      %p99 = scmp.ne.s32.totalorder %s87, %s88
      %p100 = scmp.eq.s32.totalorder %s31, 1
      %p101 = por %p99, %p100
      %p103 = scmp.ne.s32.totalorder %s88, %s102
      %p104 = scmp.eq.s32.totalorder %s31, 0
      %p105 = por %p103, %p104
      %s106 = ssub.s32 %s25, %s32
      %p107 = scmp.eq.s32.totalorder %s106, 0
      %s109 = sadd.s32 %s108, 1
      %s110 = scalar_select %p107, %s108, %s109
      %p113 = pneg %p107
      %p114 = scmp.eq.s32.totalorder %s25, 1
      %p115 = por %p113, %p114
      %p116 = scmp.ne.s32.totalorder %s108, %s111
      %p117 = scmp.eq.s32.totalorder %s25, 0
      %p118 = por %p116, %p117
      %p119 = scmp.ne.s32.totalorder %s108, %s111
      %p120 = scmp.eq.s32.totalorder %s30, 1
      %p121 = por %p119, %p120
      %p122 = scmp.ne.s32.totalorder %s111, %s112
      %p123 = scmp.eq.s32.totalorder %s30, 0
      %p124 = por %p122, %p123
      %p125 = scmp.ne.s32.totalorder %s111, %s112
      %p126 = scmp.eq.s32.totalorder %s31, 1
      %p127 = por %p125, %p126
      %p129 = scmp.ne.s32.totalorder %s112, %s128
      %p130 = scmp.eq.s32.totalorder %s31, 0
      %p131 = por %p129, %p130
      %s132 = ssub.s32 %s25, %s32
      %p133 = scmp.eq.s32.totalorder %s132, 0
      %s135 = sadd.s32 %s134, 1
      %s136 = scalar_select %p133, %s134, %s135
      %p139 = pneg %p133
      %p140 = scmp.eq.s32.totalorder %s25, 1
      %p141 = por %p139, %p140
      %p142 = scmp.ne.s32.totalorder %s134, %s137
      %p143 = scmp.eq.s32.totalorder %s25, 0
      %p144 = por %p142, %p143
      %p145 = scmp.ne.s32.totalorder %s134, %s137
      %p146 = scmp.eq.s32.totalorder %s30, 1
      %p147 = por %p145, %p146
      %p148 = scmp.ne.s32.totalorder %s137, %s138
      %p149 = scmp.eq.s32.totalorder %s30, 0
      %p150 = por %p148, %p149
      %p151 = scmp.ne.s32.totalorder %s137, %s138
      %p152 = scmp.eq.s32.totalorder %s31, 1
      %p153 = por %p151, %p152
      %p155 = scmp.ne.s32.totalorder %s138, %s154
      %p156 = scmp.eq.s32.totalorder %s31, 0
      %p157 = por %p155, %p156
      %s158 = ssub.s32 %s25, %s32
      %p159 = scmp.eq.s32.totalorder %s158, 0
      %s161 = sadd.s32 %s160, 1
      %s162 = scalar_select %p159, %s160, %s161
      %p165 = pneg %p159
      %p166 = scmp.eq.s32.totalorder %s25, 1
      %p167 = por %p165, %p166
      %p168 = scmp.ne.s32.totalorder %s160, %s163
      %p169 = scmp.eq.s32.totalorder %s25, 0
      %p170 = por %p168, %p169
      %p171 = scmp.ne.s32.totalorder %s160, %s163
      %p172 = scmp.eq.s32.totalorder %s30, 1
      %p173 = por %p171, %p172
      %p174 = scmp.ne.s32.totalorder %s163, %s164
      %p175 = scmp.eq.s32.totalorder %s30, 0
      %p176 = por %p174, %p175
      %p177 = scmp.ne.s32.totalorder %s163, %s164
      %p178 = scmp.eq.s32.totalorder %s31, 1
      %p179 = por %p177, %p178
      %p181 = scmp.ne.s32.totalorder %s164, %s180
      %p182 = scmp.eq.s32.totalorder %s31, 0
      %p183 = por %p181, %p182
      %p184 = scmp.le.s32.totalorder 1, %s25
      %p185 = scmp.lt.s32.totalorder %s25, 3
      %p186 = pnand %p184, %p185
      %p187 = pneg %p186
      // Predicated region
      $region9: #{tpu_custom_call.1} parent=5 // pred_check
        _
      $region10: #{tpu_custom_call.1} parent=5 // pred_check_branch
        %189 = sbr.rel (%p186) target = $region12
      $region11: #{tpu_custom_call.1} parent=5 // pred_region
        %s190 = ssub.s32 %s25, 1
        // Predicated region
        $region13: #{tpu_custom_call.1} parent=11 // pred_check
          %p191 = pneg %p98
        $region14: #{tpu_custom_call.1} parent=11 // pred_check_branch
          %193 = sbr.rel (%p191) target = $region16
        $region15: #{tpu_custom_call.1} parent=11 // pred_region
          _
        $region16: #{tpu_custom_call.1} parent=11 // pred_fallthru
          _
      $region12: #{tpu_custom_call.1} parent=5 // pred_fallthru
        _
      %p194 = scmp.lt.s32.totalorder %s25, 2
      // Predicated region
      $region17: #{tpu_custom_call.1} parent=5 // pred_check
        %p195 = pneg %p194
      $region18: #{tpu_custom_call.1} parent=5 // pred_check_branch
        %197 = sbr.rel (%p195) target = $region20
      $region19: #{tpu_custom_call.1} parent=5 // pred_region
        // Predicated region
        $region21: #{tpu_custom_call.1} parent=19 // pred_check
          %p198 = pneg %p45
        $region22: #{tpu_custom_call.1} parent=19 // pred_check_branch
          %200 = sbr.rel (%p198) target = $region24
        $region23: #{tpu_custom_call.1} parent=19 // pred_region
          %p201 = scmp.lt.s32.totalorder %s25, 1
          %s202 = scalar_select %p201, %s25, 1
          %s203 = smul.addr %s202, 2
          %s204 = smul.addr %s203, 8
          %s205 = scalar_lea.vmem %s1, %s204
        $region24: #{tpu_custom_call.1} parent=19 // pred_fallthru
          _
        // Predicated region
        $region25: #{tpu_custom_call.1} parent=19 // pred_check
          %p206 = pneg %p71
        $region26: #{tpu_custom_call.1} parent=19 // pred_check_branch
          %208 = sbr.rel (%p206) target = $region28
        $region27: #{tpu_custom_call.1} parent=19 // pred_region
          %p209 = scmp.lt.s32.totalorder %s25, 1
          %s210 = scalar_select %p209, %s25, 1
          %s211 = smul.addr %s210, 16
          %s212 = smul.addr %s211, 8
          %s213 = scalar_lea.vmem %s2, %s212
        $region28: #{tpu_custom_call.1} parent=19 // pred_fallthru
          _
      $region20: #{tpu_custom_call.1} parent=5 // pred_fallthru
        _
      %p214 = scmp.le.s32.totalorder 1, %s25
      %p215 = scmp.lt.s32.totalorder %s25, 3
      %p216 = pnand %p214, %p215
      %p217 = pneg %p216
      // Predicated region
      $region29: #{tpu_custom_call.1} parent=5 // pred_check
        _
      $region30: #{tpu_custom_call.1} parent=5 // pred_check_branch
        %219 = sbr.rel (%p216) target = $region32
      $region31: #{tpu_custom_call.1} parent=5 // pred_region
        %s220 = ssub.s32 %s25, 1
        %p221 = scmp.lt.s32.totalorder %s30, 1
        %s222 = scalar_select %p221, %s30, 1
        %s223 = smul.addr %s222, 2
        %s224 = smul.addr %s223, 8
        %s225 = scalar_lea.vmem %s1, %s224
        %p226 = pneg %p51
        %p227 = pneg %p48
        %p228 = scmp.lt.s32.totalorder %s30, 1
        %s229 = scalar_select %p228, %s30, 1
        %s230 = smul.addr %s229, 16
        %s231 = smul.addr %s230, 8
        %s232 = scalar_lea.vmem %s2, %s231
        %p233 = pneg %p77
        %p234 = pneg %p74
        %p235 = pneg %p98
        %p236 = pneg %p95
        %p237 = pneg %p124
        %p238 = pneg %p121
        %s239 = sand.u32 %s111, 1
        %s240 = scalar_lea.sflag [#allocation5], %s239
        %s241 = sand.u32 %s111, 1
        %s242 = smul.addr %s241, 16
        %s243 = scalar_lea.vmem [#allocation4], %s242
        %p244 = pneg %p150
        %p245 = pneg %p147
        %s246 = sand.u32 %s30, 1
        %s247 = scalar_lea.sflag [#allocation7], %s246
        %s248 = sand.u32 %s137, 1
        %s249 = scalar_lea.vmem [#allocation6], %s248
        %p250 = pneg %p176
        %p251 = pneg %p173
        %s252 = sand.u32 %s30, 1
        %s253 = scalar_lea.sflag [#allocation7], %s252
        %s254 = sand.u32 %s163, 1
        %s255 = smul.addr %s254, 16
        %s256 = scalar_lea.vmem [#allocation8], %s255
        %p257 = scmp.lt.s32.totalorder %s30, 1
        %s258 = scalar_select %p257, %s30, 1
        %s259 = smul.addr %s258, 2
        %s260 = smul.addr %s259, 8
        %s261 = scalar_lea.vmem %s1, %s260
        %p262 = scmp.lt.s32.totalorder %s30, 1
        %s263 = scalar_select %p262, %s30, 1
        %s264 = smul.addr %s263, 16
        %s265 = smul.addr %s264, 8
        %s266 = scalar_lea.vmem %s2, %s265
        %s268 = sld [smem:[#allocation3 + %s30]]
        %v269 = vld [vmem:[%s3] sm:$0xf]
        %v270 = vrot.slane %v269, 3
        %s271 = vtos %v270
        %v272 = vld [vmem:[%s261] sm:$0xff]
        %v273 = vld [vmem:[%s261 + $0x8] sm:$0xff]
        %v274 = vld [vmem:[%s266] sm:$0xff]
        %v275 = vld [vmem:[%s266 + $0x8] sm:$0xff]
        %v276 = vld [vmem:[%s266 + $0x10] sm:$0xff]
        %v277 = vld [vmem:[%s266 + $0x18] sm:$0xff]
        %v278 = vld [vmem:[%s266 + $0x20] sm:$0xff]
        %v279 = vld [vmem:[%s266 + $0x28] sm:$0xff]
        %v280 = vld [vmem:[%s266 + $0x30] sm:$0xff]
        %v281 = vld [vmem:[%s266 + $0x38] sm:$0xff]
        %v282 = vld [vmem:[%s266 + $0x40] sm:$0xff]
        %v283 = vld [vmem:[%s266 + $0x48] sm:$0xff]
        %v284 = vld [vmem:[%s266 + $0x50] sm:$0xff]
        %v285 = vld [vmem:[%s266 + $0x58] sm:$0xff]
        %v286 = vld [vmem:[%s266 + $0x60] sm:$0xff]
        %v287 = vld [vmem:[%s266 + $0x68] sm:$0xff]
        %v288 = vld [vmem:[%s266 + $0x70] sm:$0xff]
        %v289 = vld [vmem:[%s266 + $0x78] sm:$0xff]
        %v290 = vlaneseq
        %v291 = vand.u32 %v290, 127
        %v292 = vstv %s268
        %vm293 = vcmp.lt.s32.totalorder %v291, %v292
        %v294 = vsel %vm293, 0.0, -1e+09
        %v295 = vpack.c.bf16 %v273, %v272
        %v296 = vlaneseq
        %v297 = vshrl.u32 %v296, 7
        %v298 = vsub.s32 2, %v297
        %v299 = vrot.slane %v269, %v298
        %v300 = vmul.f32 %v274, %v299
        %v301 = vmul.f32 %v275, %v299
        %v302 = vmul.f32 %v276, %v299
        %v303 = vmul.f32 %v277, %v299
        %v304 = vmul.f32 %v278, %v299
        %v305 = vmul.f32 %v279, %v299
        %v306 = vmul.f32 %v280, %v299
        %v307 = vmul.f32 %v281, %v299
        %v308 = vmul.f32 %v282, %v299
        %v309 = vmul.f32 %v283, %v299
        %v310 = vmul.f32 %v284, %v299
        %v311 = vmul.f32 %v285, %v299
        %v312 = vmul.f32 %v286, %v299
        %v313 = vmul.f32 %v287, %v299
        %v314 = vmul.f32 %v288, %v299
        %v315 = vmul.f32 %v289, %v299
        %v316 = vpack.c.bf16 %v301, %v300
        %v317 = vpack.c.bf16 %v303, %v302
        %v318 = vpack.c.bf16 %v305, %v304
        %v319 = vpack.c.bf16 %v307, %v306
        %v320 = vpack.c.bf16 %v309, %v308
        %v321 = vpack.c.bf16 %v311, %v310
        %v322 = vpack.c.bf16 %v313, %v312
        %v323 = vpack.c.bf16 %v315, %v314
        %v324 = vlaneseq
        %v325 = vshrl.u32 %v324, 7
        %v326 = vsub.s32 0, %v325
        %v327 = vrot.slane %v269, %v326
        %v328 = vmul.f32 %v272, %v327
        %v329 = vmul.f32 %v273, %v327
        %vm330 = vcmask 261120
        %v331 = vsel %vm330, %v328, 0.0
        %332 = vadd.xlane.f32.xlu0 %v331
        %v333 = vpop.xlane.xlu0 %332
        %v334 = vsel %vm330, %v329, 0.0
        %335 = vadd.xlane.f32.xlu0 %v334
        %v336 = vpop.xlane.xlu0 %335
        %v337 = vlaneseq
        %v338 = vshrl.u32 %v337, 7
        %v339 = vsub.s32 1, %v338
        %v340 = vrot.slane %v269, %v339
        %v341 = vmul.f32 %v274, %v340
        %v342 = vmul.f32 %v275, %v340
        %v343 = vmul.f32 %v276, %v340
        %v344 = vmul.f32 %v277, %v340
        %v345 = vmul.f32 %v278, %v340
        %v346 = vmul.f32 %v279, %v340
        %v347 = vmul.f32 %v280, %v340
        %v348 = vmul.f32 %v281, %v340
        %v349 = vmul.f32 %v282, %v340
        %v350 = vmul.f32 %v283, %v340
        %v351 = vmul.f32 %v284, %v340
        %v352 = vmul.f32 %v285, %v340
        %v353 = vmul.f32 %v286, %v340
        %v354 = vmul.f32 %v287, %v340
        %v355 = vmul.f32 %v288, %v340
        %v356 = vmul.f32 %v289, %v340
        %v357 = vsel %vm330, %v341, 0.0
        %358 = vadd.xlane.f32.xlu0 %v357
        %v359 = vpop.xlane.xlu0 %358
        %v360 = vsel %vm330, %v342, 0.0
        %361 = vadd.xlane.f32.xlu0 %v360
        %v362 = vpop.xlane.xlu0 %361
        %v363 = vsel %vm330, %v343, 0.0
        %364 = vadd.xlane.f32.xlu0 %v363
        %v365 = vpop.xlane.xlu0 %364
        %v366 = vsel %vm330, %v344, 0.0
        %367 = vadd.xlane.f32.xlu0 %v366
        %v368 = vpop.xlane.xlu0 %367
        %v369 = vsel %vm330, %v345, 0.0
        %370 = vadd.xlane.f32.xlu0 %v369
        %v371 = vpop.xlane.xlu0 %370
        %v372 = vsel %vm330, %v346, 0.0
        %373 = vadd.xlane.f32.xlu0 %v372
        %v374 = vpop.xlane.xlu0 %373
        %v375 = vsel %vm330, %v347, 0.0
        %376 = vadd.xlane.f32.xlu0 %v375
        %v377 = vpop.xlane.xlu0 %376
        %v378 = vsel %vm330, %v348, 0.0
        %379 = vadd.xlane.f32.xlu0 %v378
        %v380 = vpop.xlane.xlu0 %379
        %v381 = vsel %vm330, %v349, 0.0
        %382 = vadd.xlane.f32.xlu0 %v381
        %v383 = vpop.xlane.xlu0 %382
        %v384 = vsel %vm330, %v350, 0.0
        %385 = vadd.xlane.f32.xlu0 %v384
        %v386 = vpop.xlane.xlu0 %385
        %v387 = vsel %vm330, %v351, 0.0
        %388 = vadd.xlane.f32.xlu0 %v387
        %v389 = vpop.xlane.xlu0 %388
        %v390 = vsel %vm330, %v352, 0.0
        %391 = vadd.xlane.f32.xlu0 %v390
        %v392 = vpop.xlane.xlu0 %391
        %v393 = vsel %vm330, %v353, 0.0
        %394 = vadd.xlane.f32.xlu0 %v393
        %v395 = vpop.xlane.xlu0 %394
        %v396 = vsel %vm330, %v354, 0.0
        %397 = vadd.xlane.f32.xlu0 %v396
        %v398 = vpop.xlane.xlu0 %397
        %v399 = vsel %vm330, %v355, 0.0
        %400 = vadd.xlane.f32.xlu0 %v399
        %v401 = vpop.xlane.xlu0 %400
        %v402 = vsel %vm330, %v356, 0.0
        %403 = vadd.xlane.f32.xlu0 %v402
        %v404 = vpop.xlane.xlu0 %403
        %405 = vxpose.xlu0.b32.start [1/16] %v359, 128
        %406 = vxpose.xlu0.b32.cont [2/16] %v362, 128
        %407 = vxpose.xlu0.b32.cont [3/16] %v365, 128
        %408 = vxpose.xlu0.b32.cont [4/16] %v368, 128
        %409 = vxpose.xlu0.b32.cont [5/16] %v371, 128
        %410 = vxpose.xlu0.b32.cont [6/16] %v374, 128
        %411 = vxpose.xlu0.b32.cont [7/16] %v377, 128
        %412 = vxpose.xlu0.b32.cont [8/16] %v380, 128
        %413 = vxpose.xlu0.b32.cont [9/16] %v383, 128
        %414 = vxpose.xlu0.b32.cont [10/16] %v386, 128
        %415 = vxpose.xlu0.b32.cont [11/16] %v389, 128
        %416 = vxpose.xlu0.b32.cont [12/16] %v392, 128
        %417 = vxpose.xlu0.b32.cont [13/16] %v395, 128
        %418 = vxpose.xlu0.b32.cont [14/16] %v398, 128
        %419 = vxpose.xlu0.b32.cont [15/16] %v401, 128
        %420 = vxpose.xlu0.b32.end [16/16] %v404, 128
        %v421 = vpop.trf.xlu0
        %v422 = vpop.trf.xlu0
        %v423 = vpop.trf.xlu0
        %v424 = vpop.trf.xlu0
        %v425 = vpop.trf.xlu0
        %v426 = vpop.trf.xlu0
        %v427 = vpop.trf.xlu0
        %v428 = vpop.trf.xlu0
        %v429 = vpop.trf.xlu0
        %v430 = vpop.trf.xlu0
        %v431 = vpop.trf.xlu0
        %v432 = vpop.trf.xlu0
        %v433 = vpop.trf.xlu0
        %v434 = vpop.trf.xlu0
        %v435 = vpop.trf.xlu0
        %v436 = vpop.trf.xlu0
        %v438 = vsel %vm330, %v295, 0
        %v441 = vsel %vm330, %v316, 0
        %v444 = vsel %vm330, %v317, 0
        %v447 = vsel %vm330, %v318, 0
        %v450 = vsel %vm330, %v319, 0
        %v453 = vsel %vm330, %v320, 0
        %v456 = vsel %vm330, %v321, 0
        %v459 = vsel %vm330, %v322, 0
        %v462 = vsel %vm330, %v323, 0
        %464 = vmatprep.subr.bf16.mxu0 0
        %465 = vmatpush1.bf16.xpose.msra.mxu0 %v441
        %466 = vmatprep.subr.bf16.mxu0 0
        %467 = vmatpush1.bf16.xpose.msra.mxu0 %v444
        %468 = vmatprep.subr.bf16.mxu0 0
        %469 = vmatpush1.bf16.xpose.msra.mxu0 %v447
        %470 = vmatprep.subr.bf16.mxu0 0
        %471 = vmatpush1.bf16.xpose.msra.mxu0 %v450
        %472 = vmatprep.subr.bf16.mxu0 0
        %473 = vmatpush1.bf16.xpose.msra.mxu0 %v453
        %474 = vmatprep.subr.bf16.mxu0 0
        %475 = vmatpush1.bf16.xpose.msra.mxu0 %v456
        %476 = vmatprep.subr.bf16.mxu0 0
        %477 = vmatpush1.bf16.xpose.msra.mxu0 %v459
        %478 = vmatprep.subr.bf16.mxu0 0
        %479 = vmatpush1.bf16.xpose.msra.mxu0 %v462
        %480 = vmatprep.subr.bf16.mxu0 0
        %481 = vmatpush1.bf16.xpose.msra.mxu0 0
        %482 = vmatprep.subr.bf16.mxu0 0
        %483 = vmatpush1.bf16.xpose.msra.mxu0 0
        %484 = vmatprep.subr.bf16.mxu0 0
        %485 = vmatpush1.bf16.xpose.msra.mxu0 0
        %486 = vmatprep.subr.bf16.mxu0 0
        %487 = vmatpush1.bf16.xpose.msra.mxu0 0
        %488 = vmatprep.subr.bf16.mxu0 0
        %489 = vmatpush1.bf16.xpose.msra.mxu0 0
        %490 = vmatprep.subr.bf16.mxu0 0
        %491 = vmatpush1.bf16.xpose.msra.mxu0 0
        %492 = vmatprep.subr.bf16.mxu0 0
        %493 = vmatpush1.bf16.xpose.msra.mxu0 0
        %494 = vmatprep.subr.bf16.mxu0 0
        %495 = vmatpush1.bf16.xpose.msra.mxu0 0
        %496 = vmatprep.mubr.bf16.mxu0 0
        %497 = vmatmul.mubr.bf16.gmra.mrb[0].mxu0 %v438
        %v498 = vpop.f32.mrb[0].mxu0
        %v499 = vadd.f32 %v333, %v498
        %v500 = vpop.f32.mrb[0].mxu0
        %v501 = vpop.f32.mrb[0].mxu0
        %v502 = vadd.f32 %v336, %v501
        %v503 = vpop.f32.mrb[0].mxu0
        %504 = vdwg.mxu0
        %v505 = vstv %s271
        %v506 = vadd.f32 %v421, %v505
        %v507 = vadd.f32 %v506, %v294
        %v508 = vlaneseq
        %v509 = vshrl.u32 %v508, 7
        %v510 = vsub.s32 0, %v509
        %v511 = vrot.slane %v507, %v510
        %v512 = vadd.f32 %v499, %v511
        %v513 = vadd.f32 %v502, %v511
        %514 = vmax.xlane.f32.xlu0 %v512
        %v515 = vpop.xlane.xlu0 %514
        %516 = vmax.xlane.f32.xlu0 %v513
        %v517 = vpop.xlane.xlu0 %516
        %v518 = vsub.f32 %v512, %v515
        %v519 = vsub.f32 %v513, %v517
        %v520 = vmul.f32 %v518, 1.442695
        %v521 = vpow.pop %v520
        %v522 = vmul.f32 %v519, 1.442695
        %v523 = vpow.pop %v522
        %524 = vadd.xlane.f32.xlu0 %v521
        %v525 = vpop.xlane.xlu0 %524
        %526 = vadd.xlane.f32.xlu0 %v523
        %v527 = vpop.xlane.xlu0 %526
        %v528 = vrcp.pop %v525
        %v529 = vrcp.pop %v527
        %v530 = vmul.f32 %v521, %v528
        %v531 = vmul.f32 %v523, %v529
        %532 = vxpose.xlu0.b32.start [1/16] %v515, 128
        %533 = vxpose.xlu0.b32.cont [2/16] %v517, 128
        %534 = vxpose.xlu0.b32.cont [3/16] 0.0, 128
        %535 = vxpose.xlu0.b32.cont [4/16] 0.0, 128
        %536 = vxpose.xlu0.b32.cont [5/16] 0.0, 128
        %537 = vxpose.xlu0.b32.cont [6/16] 0.0, 128
        %538 = vxpose.xlu0.b32.cont [7/16] 0.0, 128
        %539 = vxpose.xlu0.b32.cont [8/16] 0.0, 128
        %540 = vxpose.xlu0.b32.cont [9/16] 0.0, 128
        %541 = vxpose.xlu0.b32.cont [10/16] 0.0, 128
        %542 = vxpose.xlu0.b32.cont [11/16] 0.0, 128
        %543 = vxpose.xlu0.b32.cont [12/16] 0.0, 128
        %544 = vxpose.xlu0.b32.cont [13/16] 0.0, 128
        %545 = vxpose.xlu0.b32.cont [14/16] 0.0, 128
        %546 = vxpose.xlu0.b32.cont [15/16] 0.0, 128
        %547 = vxpose.xlu0.b32.end [16/16] 0.0, 128
        %v548 = vpop.trf.xlu0
        %v549 = vpop.trf.xlu0
        %v550 = vpop.trf.xlu0
        %v551 = vpop.trf.xlu0
        %v552 = vpop.trf.xlu0
        %v553 = vpop.trf.xlu0
        %v554 = vpop.trf.xlu0
        %v555 = vpop.trf.xlu0
        %v556 = vpop.trf.xlu0
        %v557 = vpop.trf.xlu0
        %v558 = vpop.trf.xlu0
        %v559 = vpop.trf.xlu0
        %v560 = vpop.trf.xlu0
        %v561 = vpop.trf.xlu0
        %v562 = vpop.trf.xlu0
        %v563 = vpop.trf.xlu0
        %vm564 = vcmask 122880
        %v565 = vsel %vm564, %v548, -inf
        %566 = vmax.xlane.f32.xlu0 %v565
        %v567 = vpop.xlane.xlu0 %566
        %v568 = vsub.f32 %v548, %v567
        %v569 = vmul.f32 %v568, 1.442695
        %v570 = vpow.pop %v569
        %v571 = vsel %vm564, %v570, 0.0
        %572 = vadd.xlane.f32.xlu0 %v571
        %v573 = vpop.xlane.xlu0 %572
        %v574 = vrcp.pop %v573
        %v575 = vmul.f32 %v570, %v574
        %v576 = vpack.c.bf16 %v531, %v530
        %v577 = vpack.c.bf16 %v275, %v274
        %v578 = vpack.c.bf16 %v277, %v276
        %v579 = vpack.c.bf16 %v279, %v278
        %v580 = vpack.c.bf16 %v281, %v280
        %v581 = vpack.c.bf16 %v283, %v282
        %v582 = vpack.c.bf16 %v285, %v284
        %v583 = vpack.c.bf16 %v287, %v286
        %v584 = vpack.c.bf16 %v289, %v288
        %585 = vmatprep.subr.bf16.mxu0 0
        %586 = vmatpush1.bf16.msra.mxu0 %v577
        %587 = vmatprep.subr.bf16.mxu0 0
        %588 = vmatpush1.bf16.msra.mxu0 %v578
        %589 = vmatprep.subr.bf16.mxu0 0
        %590 = vmatpush1.bf16.msra.mxu0 %v579
        %591 = vmatprep.subr.bf16.mxu0 0
        %592 = vmatpush1.bf16.msra.mxu0 %v580
        %593 = vmatprep.subr.bf16.mxu0 0
        %594 = vmatpush1.bf16.msra.mxu0 %v581
        %595 = vmatprep.subr.bf16.mxu0 0
        %596 = vmatpush1.bf16.msra.mxu0 %v582
        %597 = vmatprep.subr.bf16.mxu0 0
        %598 = vmatpush1.bf16.msra.mxu0 %v583
        %599 = vmatprep.subr.bf16.mxu0 0
        %600 = vmatpush1.bf16.msra.mxu0 %v584
        %601 = vmatprep.subr.bf16.mxu0 0
        %602 = vmatpush1.bf16.msra.mxu0 0
        %603 = vmatprep.subr.bf16.mxu0 0
        %604 = vmatpush1.bf16.msra.mxu0 0
        %605 = vmatprep.subr.bf16.mxu0 0
        %606 = vmatpush1.bf16.msra.mxu0 0
        %607 = vmatprep.subr.bf16.mxu0 0
        %608 = vmatpush1.bf16.msra.mxu0 0
        %609 = vmatprep.subr.bf16.mxu0 0
        %610 = vmatpush1.bf16.msra.mxu0 0
        %611 = vmatprep.subr.bf16.mxu0 0
        %612 = vmatpush1.bf16.msra.mxu0 0
        %613 = vmatprep.subr.bf16.mxu0 0
        %614 = vmatpush1.bf16.msra.mxu0 0
        %615 = vmatprep.subr.bf16.mxu0 0
        %616 = vmatpush1.bf16.msra.mxu0 0
        %617 = vmatprep.mubr.bf16.mxu0 0
        %618 = vmatmul.mubr.bf16.gmra.mrb[0].mxu0 %v576
        %v619 = vpop.f32.mrb[0].mxu0
        %v620 = vadd.f32 0.0, %v619
        %v621 = vpop.f32.mrb[0].mxu0
        %v622 = vpop.f32.mrb[0].mxu0
        %v623 = vadd.f32 0.0, %v622
        %v624 = vpop.f32.mrb[0].mxu0
        %625 = vdwg.mxu0
        %626 = vxpose.xlu0.b32.start [1/16] %v575, 128
        %627 = vxpose.xlu0.b32.cont [2/16] 0.0, 128
        %628 = vxpose.xlu0.b32.cont [3/16] 0.0, 128
        %629 = vxpose.xlu0.b32.cont [4/16] 0.0, 128
        %630 = vxpose.xlu0.b32.cont [5/16] 0.0, 128
        %631 = vxpose.xlu0.b32.cont [6/16] 0.0, 128
        %632 = vxpose.xlu0.b32.cont [7/16] 0.0, 128
        %633 = vxpose.xlu0.b32.cont [8/16] 0.0, 128
        %634 = vxpose.xlu0.b32.cont [9/16] 0.0, 128
        %635 = vxpose.xlu0.b32.cont [10/16] 0.0, 128
        %636 = vxpose.xlu0.b32.cont [11/16] 0.0, 128
        %637 = vxpose.xlu0.b32.cont [12/16] 0.0, 128
        %638 = vxpose.xlu0.b32.cont [13/16] 0.0, 128
        %639 = vxpose.xlu0.b32.cont [14/16] 0.0, 128
        %640 = vxpose.xlu0.b32.cont [15/16] 0.0, 128
        %641 = vxpose.xlu0.b32.end [16/16] 0.0, 128
        %v642 = vpop.trf.xlu0
        %v643 = vpop.trf.xlu0
        %v644 = vpop.trf.xlu0
        %v645 = vpop.trf.xlu0
        %v646 = vpop.trf.xlu0
        %v647 = vpop.trf.xlu0
        %v648 = vpop.trf.xlu0
        %v649 = vpop.trf.xlu0
        %v650 = vpop.trf.xlu0
        %v651 = vpop.trf.xlu0
        %v652 = vpop.trf.xlu0
        %v653 = vpop.trf.xlu0
        %v654 = vpop.trf.xlu0
        %v655 = vpop.trf.xlu0
        %v656 = vpop.trf.xlu0
        %v657 = vpop.trf.xlu0
        %659 = vset.pattern.permute.xlu0 0
        %660 = vperm.xlu0 %659, %v642
        %v661 = vpop.permute.xlu0 %660
        %664 = vset.pattern.permute.xlu0 0
        %665 = vperm.xlu0 %664, %v643
        %v666 = vpop.permute.xlu0 %665
        %v668 = vmul.f32 %v661, %v272
        %v669 = vmul.f32 %v666, %v273
        %v670 = vsel %vm330, %v668, 0.0
        %v671 = vsel %vm330, %v669, 0.0
        %v672 = vadd.f32 %v670, %v671
        %v673 = vrot.slane %v672, 4
        %v674 = vadd.f32 %v672, %v673
        %v675 = vrot.slane %v674, 2
        %v676 = vadd.f32 %v674, %v675
        %v677 = vrot.slane %v676, 1
        %v678 = vadd.f32 %v676, %v677
        %679 = vst [vmem:[%s243] sm:$0xff] %v530
        %680 = vst [vmem:[%s243 + $0x8] sm:$0xff] %v531
        %681 = vst.msk [vmem:[%s249] sm:$0x1] %vm564, %v575
        %v682 = vmul.f32 %v272, %v620
        %v683 = vmul.f32 %v273, %v623
        %v684 = vmul.f32 %v272, %v678
        %v685 = vmul.f32 %v273, %v678
        %688 = vrot.lane.b32.xlu0 %v620, 32
        %v689 = vpop.permute.xlu0 %688
        %690 = vrot.lane.b32.xlu0 %v623, 32
        %v691 = vpop.permute.xlu0 %690
        %696 = vrot.lane.b32.xlu0 %v682, 64
        %v697 = vpop.permute.xlu0 %696
        %698 = vrot.lane.b32.xlu0 %v683, 64
        %v699 = vpop.permute.xlu0 %698
        %704 = vrot.lane.b32.xlu0 %v684, 96
        %v705 = vpop.permute.xlu0 %704
        %706 = vrot.lane.b32.xlu0 %v685, 96
        %v707 = vpop.permute.xlu0 %706
        %v710 = vsel %vm330, %v272, %v689
        %v711 = vsel %vm330, %v273, %v691
        %vm712 = vcmask 523264
        %v713 = vsel %vm712, %v710, %v697
        %v714 = vsel %vm712, %v711, %v699
        %vm715 = vcmask 785408
        %v716 = vsel %vm715, %v713, %v705
        %v717 = vsel %vm715, %v714, %v707
        %718 = vst [vmem:[%s256] sm:$0xff] %v716
        %719 = vst [vmem:[%s256 + $0x8] sm:$0xff] %v717
        %s720 = sand.u32 %s111, 1
        %s721 = scalar_lea.sflag [#allocation5], %s720
        %s722 = sand.u32 %s111, 1
        %s723 = smul.addr %s722, 16
        %s724 = scalar_lea.vmem [#allocation4], %s723
        %s725 = sand.u32 %s30, 1
        %s726 = scalar_lea.sflag [#allocation7], %s725
        %s727 = sand.u32 %s137, 1
        %s728 = scalar_lea.vmem [#allocation6], %s727
        %s729 = sand.u32 %s30, 1
        %s730 = scalar_lea.sflag [#allocation7], %s729
        %s731 = sand.u32 %s163, 1
        %s732 = smul.addr %s731, 16
        %s733 = scalar_lea.vmem [#allocation8], %s732
        // Predicated region
        $region33: #{tpu_custom_call.1} parent=31 // pred_check
          %p734 = pneg %p121
        $region34: #{tpu_custom_call.1} parent=31 // pred_check_branch
          %736 = sbr.rel (%p734) target = $region36
        $region35: #{tpu_custom_call.1} parent=31 // pred_region
          %s738 = ssub.s32 256, 256
          %739 = vsyncadd %s721, %s738
          %s740 = smul.addr %s30, 2
          %s741 = smul.addr %s740, 128
          %s742 = scalar_lea.hbm %s4, %s741
          %s743 = sshll.u32 %s724, 4
          %s744 = int_to_ptr.vmem [resolvable:$true] %s743
          %749 = dma.vmem_to_hbm [thread:$0]  %s744, 256, %s742, %s721, 128, 128, 8
        $region36: #{tpu_custom_call.1} parent=31 // pred_fallthru
          _
        // Predicated region
        $region37: #{tpu_custom_call.1} parent=31 // pred_check
          %p750 = pneg %p147
        $region38: #{tpu_custom_call.1} parent=31 // pred_check_branch
          %752 = sbr.rel (%p750) target = $region40
        $region39: #{tpu_custom_call.1} parent=31 // pred_region
          %s754 = ssub.s32 16, 16
          %755 = vsyncadd %s726, %s754
          %s756 = smul.addr %s30, 16
          %s757 = scalar_lea.hbm %s5, %s756
          %s759 = sshll.u32 %s728, 4
          %s760 = int_to_ptr.vmem [resolvable:$true] %s759
          %762 = dma.vmem_to_hbm [thread:$0]  %s760, 16, %s757, %s726
        $region40: #{tpu_custom_call.1} parent=31 // pred_fallthru
          _
        // Predicated region
        $region41: #{tpu_custom_call.1} parent=31 // pred_check
          %p763 = pneg %p173
        $region42: #{tpu_custom_call.1} parent=31 // pred_check_branch
          %765 = sbr.rel (%p763) target = $region44
        $region43: #{tpu_custom_call.1} parent=31 // pred_region
          %s767 = ssub.s32 256, 256
          %768 = vsyncadd %s730, %s767
          %s769 = smul.addr %s30, 2
          %s770 = smul.addr %s769, 128
          %s771 = scalar_lea.hbm %s6, %s770
          %s772 = sshll.u32 %s733, 4
          %s773 = int_to_ptr.vmem [resolvable:$true] %s772
          %778 = dma.vmem_to_hbm [thread:$0]  %s773, 256, %s771, %s730, 128, 128, 8
        $region44: #{tpu_custom_call.1} parent=31 // pred_fallthru
          _
      $region32: #{tpu_custom_call.1} parent=5 // pred_fallthru
        _
      %p779 = scmp.le.s32.totalorder 2, %s25
      // Predicated region
      $region45: #{tpu_custom_call.1} parent=5 // pred_check
        %p780 = pneg %p779
      $region46: #{tpu_custom_call.1} parent=5 // pred_check_branch
        %782 = sbr.rel (%p780) target = $region48
      $region47: #{tpu_custom_call.1} parent=5 // pred_region
        %s783 = ssub.s32 %s25, 2
        // Predicated region
        $region49: #{tpu_custom_call.1} parent=47 // pred_check
          %p784 = pneg %p127
        $region50: #{tpu_custom_call.1} parent=47 // pred_check_branch
          %786 = sbr.rel (%p784) target = $region52
        $region51: #{tpu_custom_call.1} parent=47 // pred_region
          %s787 = sand.u32 %s112, 1
          %s788 = scalar_lea.sflag [#allocation5], %s787
          %s789 = sand.u32 %s112, 1
          %s790 = smul.addr %s789, 16
          %s791 = scalar_lea.vmem [#allocation4], %s790
          %792 = dma.done %s788, 256
        $region52: #{tpu_custom_call.1} parent=47 // pred_fallthru
          _
        // Predicated region
        $region53: #{tpu_custom_call.1} parent=47 // pred_check
          %p793 = pneg %p153
        $region54: #{tpu_custom_call.1} parent=47 // pred_check_branch
          %795 = sbr.rel (%p793) target = $region56
        $region55: #{tpu_custom_call.1} parent=47 // pred_region
          %s796 = sand.u32 %s31, 1
          %s797 = scalar_lea.sflag [#allocation7], %s796
          %s798 = sand.u32 %s138, 1
          %s799 = scalar_lea.vmem [#allocation6], %s798
          %800 = dma.done %s797, 16
        $region56: #{tpu_custom_call.1} parent=47 // pred_fallthru
          _
        // Predicated region
        $region57: #{tpu_custom_call.1} parent=47 // pred_check
          %p801 = pneg %p179
        $region58: #{tpu_custom_call.1} parent=47 // pred_check_branch
          %803 = sbr.rel (%p801) target = $region60
        $region59: #{tpu_custom_call.1} parent=47 // pred_region
          %s804 = sand.u32 %s31, 1
          %s805 = scalar_lea.sflag [#allocation7], %s804
          %s806 = sand.u32 %s164, 1
          %s807 = smul.addr %s806, 16
          %s808 = scalar_lea.vmem [#allocation8], %s807
          %809 = dma.done %s805, 256
        $region60: #{tpu_custom_call.1} parent=47 // pred_fallthru
          _
      $region48: #{tpu_custom_call.1} parent=5 // pred_fallthru
        _
    $region6: #{tpu_custom_call.1} parent=1 // loop_footer
      %s29 = sadd.s32 1, %s25
    $region7: #{tpu_custom_call.1} parent=1 // loop_footer_branch
      %24 = sbr.rel target = $region3
    $region8: #{tpu_custom_call.1} parent=1 // loop_exit
      _
    %810 = vsyncpa [#allocation5], 1
    %s811 = scalar_lea.sflag [#allocation5], 1
    %812 = vsyncpa %s811, 1
    %813 = vsyncpa [#allocation7], 1
    %s814 = scalar_lea.sflag [#allocation7], 1
    %815 = vsyncpa %s814, 1

</llo_original>
